<compile_context>
chip_gen: v5e
topology: v5e:2x2
jax: 0.10.0
libtpu: 0.0.40
codegen_flags: <defaults>
</compile_context>

<pallas_src>
import math

import jax
import jax.numpy as jnp
from jax.experimental import pallas as pl
from jax.experimental.pallas import tpu as pltpu


def _round_up(x, m):
    return (x + m - 1) // m * m


# ----------------------------- parameter init --------------------------------

def _linear_init(key, fan_in, fan_out):
    """Matches Linear.reset_parameters: trunc_normal(std=sqrt(0.1/fan_avg), +-2*std), zero bias."""
    fan_avg = 0.5 * (fan_in + fan_out)
    std = math.sqrt(0.1 / fan_avg)
    w = jax.random.truncated_normal(key, -2.0, 2.0, (fan_in, fan_out), jnp.float32) * std
    b = jnp.zeros((fan_out,), jnp.float32)
    return w, b


def init_feedforward_params(key, width):
    k1, k2 = jax.random.split(key)
    w1, b1 = _linear_init(k1, width, 2 * width)        # Linear(2 * width)
    w2, b2 = _linear_init(k2, 2 * width, width)        # Linear(width)
    return w1, b1, w2, b2


# ------------------------- one-time weight preparation ------------------------

def _pack_factor(width):
    # Smallest p with (p * width) % 128 == 0, capped so block-diag weights stay small.
    p = 128 // math.gcd(width, 128)
    return p if p <= 8 else 1


def _block_diag(w, p):
    if p == 1:
        return w
    a, b = w.shape
    eye = jnp.eye(p, dtype=w.dtype)
    return (eye[:, None, :, None] * w[None, :, None, :]).reshape(p * a, p * b)


def prepare_feedforward_params(w1, b1, w2, b2):
    """One-time pack/cast of FeedForward weights for the Pallas kernel.

    Returns (p, w1p, b1p, w2p, b2p): block-diagonal bf16 weights and p-tiled f32
    biases in the packed lane-dense layout.  Call once at init, not per step.
    """
    width, hidden = w1.shape
    p = _pack_factor(width)
    w1p = _block_diag(w1.astype(jnp.float32), p).astype(jnp.bfloat16)   # (p*W, p*H)
    w2p = _block_diag(w2.astype(jnp.float32), p).astype(jnp.bfloat16)   # (p*H, p*W)
    b1p = jnp.tile(b1.astype(jnp.float32), p).reshape(1, p * hidden)
    b2p = jnp.tile(b2.astype(jnp.float32), p).reshape(1, p * width)
    return p, w1p, b1p, w2p, b2p


# ------------------------------- Pallas kernel --------------------------------

def _feedforward_kernel(x_ref, w1_ref, b1_ref, w2_ref, b2_ref, o_ref):
    x = x_ref[...].astype(jnp.float32)                       # residual path, f32
    a = jnp.maximum(x, 0.0).astype(jnp.bfloat16)             # ReLU -> MXU operand
    h = jnp.dot(a, w1_ref[...], preferred_element_type=jnp.float32) + b1_ref[...]
    h = jnp.maximum(h, 0.0).astype(jnp.bfloat16)             # ReLU -> MXU operand
    y = jnp.dot(h, w2_ref[...], preferred_element_type=jnp.float32) + b2_ref[...]
    o_ref[...] = (x + y).astype(o_ref.dtype)                 # residual, caller dtype


def _vmem_limit_bytes(wanted):
    try:
        cap = pltpu.get_tpu_info().vmem_capacity_bytes
    except Exception:
        cap = 128 << 20
    # Leave compiler-scratch headroom: ~48 MiB ceiling on v7x (64 MiB physical),
    # ~108 MiB on v5e/v6e (128 MiB physical).
    ceiling = int(cap * 0.75) if cap <= (64 << 20) else int(cap * 0.85)
    return int(min(max(wanted, 32 << 20), ceiling))


def _pick_tile(n_rows, row_bytes):
    # ~0.5 MiB double-buffered DMA blocks, but keep >= 8 grid steps when there
    # is enough data so the "parallel" row axis still splits across v7x's 2 TCs.
    by_bytes = max(8, (512 * 1024) // max(row_bytes, 1))
    by_grid = pl.cdiv(n_rows, 8)
    return _round_up(max(8, min(by_bytes, by_grid)), 8)


def feedforward_pallas(x, packed_params, *, tile_s=None):
    """x: (..., width), any float dtype. Returns same shape and dtype.

    packed_params = prepare_feedforward_params(w1, b1, w2, b2)  (built once).
    """
    p, w1p, b1p, w2p, b2p = packed_params
    orig_shape = x.shape
    orig_dtype = x.dtype
    width = orig_shape[-1]
    wp = p * width
    hp = w1p.shape[1]
    assert w1p.shape[0] == wp and w2p.shape == (hp, wp)

    x2 = x.reshape(-1, width)
    n = x2.shape[0]
    n_rows = _round_up(n, p)
    if n_rows != n:                                   # at most p-1 extra rows
        x2 = jnp.pad(x2, ((0, n_rows - n), (0, 0)))
    xp = x2.reshape(n_rows // p, wp)                  # lane-dense packed layout
    n_packed = xp.shape[0]

    if tile_s is None:
        tile_s = _pick_tile(n_packed, wp * orig_dtype.itemsize)
    grid = (pl.cdiv(n_packed, tile_s),)               # partial last block masked by Pallas

    wanted = (
        (w1p.size + w2p.size) * 2                     # resident bf16 weights, single-buffered
        + (b1p.size + b2p.size) * 4                   # resident f32 biases
        + 2 * tile_s * wp * orig_dtype.itemsize * 2   # x + out row tiles, double-buffered
        + 4 * tile_s * hp * 4                         # activation temporaries (f32)
        + (4 << 20)                                   # margin
    )

    out = pl.pallas_call(
        _feedforward_kernel,
        out_shape=jax.ShapeDtypeStruct((n_packed, wp), orig_dtype),
        grid=grid,
        in_specs=[
            pl.BlockSpec((tile_s, wp), lambda i: (i, 0)),        # x rows, streamed
            pl.BlockSpec((wp, hp), lambda i: (0, 0), pipeline_mode=pl.Buffered(1)),  # w1
            pl.BlockSpec((1, hp), lambda i: (0, 0), pipeline_mode=pl.Buffered(1)),   # b1
            pl.BlockSpec((hp, wp), lambda i: (0, 0), pipeline_mode=pl.Buffered(1)),  # w2
            pl.BlockSpec((1, wp), lambda i: (0, 0), pipeline_mode=pl.Buffered(1)),   # b2
        ],
        out_specs=pl.BlockSpec((tile_s, wp), lambda i: (i, 0)),
        compiler_params=pltpu.CompilerParams(
            dimension_semantics=("parallel",),        # rows independent -> megacore split
            vmem_limit_bytes=_vmem_limit_bytes(wanted),
        ),
    )(xp, w1p, b1p, w2p, b2p)

    out = out.reshape(n_rows, width)
    if n_rows != n:
        out = out[:n]
    return out.reshape(orig_shape)


# --------------------------- pure-JAX reference --------------------------------

def feedforward_reference(x, w1, b1, w2, b2):
    a = jnp.maximum(x, 0.0)
    a = a @ w1 + b1
    a = jnp.maximum(a, 0.0)
    a = a @ w2 + b2
    return x + a


if __name__ == "__main__":
    WIDTH = 32
    BATCH, SEQ = 2, 250          # 500 rows -> 125 packed 128-lane rows, 8 grid steps

    root = jax.random.PRNGKey(0)
    k_x, k_p, k_b1, k_b2 = jax.random.split(root, 4)

    x = jax.random.normal(k_x, (BATCH, SEQ, WIDTH), jnp.float32)
    w1, b1, w2, b2 = init_feedforward_params(k_p, WIDTH)
    # spec init zeroes the biases; use non-zero biases so bias handling is exercised.
    b1 = 0.1 * jax.random.normal(k_b1, b1.shape, jnp.float32)
    b2 = 0.1 * jax.random.normal(k_b2, b2.shape, jnp.float32)

    packed = prepare_feedforward_params(w1, b1, w2, b2)   # one-time pack + bf16 cast
    out = feedforward_pallas(x, packed)
    out = jax.block_until_ready(out)

    ref = feedforward_reference(x, w1, b1, w2, b2)
    assert out.shape == x.shape and out.dtype == x.dtype
    max_err = float(jnp.max(jnp.abs(out - ref)))
    assert jnp.allclose(out, ref, atol=1e-2, rtol=1e-2), f"mismatch vs reference, max_err={max_err}"

    print("KERNEL_OK")
</pallas_src>

<mosaic_0001>
module attributes {stable_mosaic.version = 11 : i64} {
  func.func @_feedforward_kernel(%arg0: i32, %arg1: memref<16x128xf32, #tpu.memory_space<vmem>>, %arg2: memref<128x256xbf16, #tpu.memory_space<vmem>>, %arg3: memref<1x256xf32, #tpu.memory_space<vmem>>, %arg4: memref<256x128xbf16, #tpu.memory_space<vmem>>, %arg5: memref<1x128xf32, #tpu.memory_space<vmem>>, %arg6: memref<16x128xf32, #tpu.memory_space<vmem>>) attributes {dimension_semantics = [#tpu.dimension_semantics<parallel>], iteration_bounds = array<i64: 8>, scalar_prefetch = 0 : i64, scratch_operands = 0 : i64, tpu.core_type = #tpu.core_type<tc>, window_params = [{transform_indices = @transform_0, window_bounds = array<i64: 16, 128>}, {pipeline_mode = #tpu.pipeline_mode<synchronous>, transform_indices = @transform_1, window_bounds = array<i64: 128, 256>}, {pipeline_mode = #tpu.pipeline_mode<synchronous>, transform_indices = @transform_2, window_bounds = array<i64: 1, 256>}, {pipeline_mode = #tpu.pipeline_mode<synchronous>, transform_indices = @transform_3, window_bounds = array<i64: 256, 128>}, {pipeline_mode = #tpu.pipeline_mode<synchronous>, transform_indices = @transform_4, window_bounds = array<i64: 1, 128>}, {transform_indices = @transform_5, window_bounds = array<i64: 16, 128>}]} {
    %c0 = arith.constant 0 : index
    %c0_0 = arith.constant 0 : index
    %0 = vector.load %arg1[%c0, %c0_0] : memref<16x128xf32, #tpu.memory_space<vmem>>, vector<16x128xf32>
    %cst = arith.constant 0.000000e+00 : f32
    %1 = vector.broadcast %cst : f32 to vector<16x128xf32>
    %2 = arith.maximumf %0, %1 : vector<16x128xf32>
    %3 = arith.truncf %2 : vector<16x128xf32> to vector<16x128xbf16>
    %c0_1 = arith.constant 0 : index
    %c0_2 = arith.constant 0 : index
    %4 = vector.load %arg2[%c0_1, %c0_2] : memref<128x256xbf16, #tpu.memory_space<vmem>>, vector<128x256xbf16>
    %cst_3 = arith.constant dense<0.000000e+00> : vector<16x256xf32>
    %5 = tpu.matmul %3, %4, %cst_3 {dimension_numbers = #tpu.dot_dimension_numbers<[1], [0], [0], [1], [0, 0, 1, 1], [], []>} : vector<16x128xbf16>, vector<128x256xbf16>, vector<16x256xf32> -> vector<16x256xf32>
    %c0_4 = arith.constant 0 : index
    %c0_5 = arith.constant 0 : index
    %6 = vector.load %arg3[%c0_4, %c0_5] : memref<1x256xf32, #tpu.memory_space<vmem>>, vector<1x256xf32>
    %7 = vector.broadcast %6 : vector<1x256xf32> to vector<16x256xf32>
    %8 = arith.addf %5, %7 : vector<16x256xf32>
    %cst_6 = arith.constant 0.000000e+00 : f32
    %9 = vector.broadcast %cst_6 : f32 to vector<16x256xf32>
    %10 = arith.maximumf %8, %9 : vector<16x256xf32>
    %11 = arith.truncf %10 : vector<16x256xf32> to vector<16x256xbf16>
    %c0_7 = arith.constant 0 : index
    %c0_8 = arith.constant 0 : index
    %12 = vector.load %arg4[%c0_7, %c0_8] : memref<256x128xbf16, #tpu.memory_space<vmem>>, vector<256x128xbf16>
    %cst_9 = arith.constant dense<0.000000e+00> : vector<16x128xf32>
    %13 = tpu.matmul %11, %12, %cst_9 {dimension_numbers = #tpu.dot_dimension_numbers<[1], [0], [0], [1], [0, 0, 1, 1], [], []>} : vector<16x256xbf16>, vector<256x128xbf16>, vector<16x128xf32> -> vector<16x128xf32>
    %c0_10 = arith.constant 0 : index
    %c0_11 = arith.constant 0 : index
    %14 = vector.load %arg5[%c0_10, %c0_11] : memref<1x128xf32, #tpu.memory_space<vmem>>, vector<1x128xf32>
    %15 = vector.broadcast %14 : vector<1x128xf32> to vector<16x128xf32>
    %16 = arith.addf %13, %15 : vector<16x128xf32>
    %17 = arith.addf %0, %16 : vector<16x128xf32>
    %c0_12 = arith.constant 0 : index
    %c0_13 = arith.constant 0 : index
    %18 = vector.load %arg6[%c0_12, %c0_13] : memref<16x128xf32, #tpu.memory_space<vmem>>, vector<16x128xf32>
    tpu.vector_store %arg6[%c0_12, %c0_13], %17 {strides = array<i32>} : memref<16x128xf32, #tpu.memory_space<vmem>>, vector<16x128xf32>,
    return
  }
  func.func @transform_0(%arg0: i32) -> (i32, i32) {
    %c0_i32 = arith.constant 0 : i32
    %c0_i32_0 = arith.constant 0 : i32
    return %arg0, %c0_i32 : i32, i32
  }
  func.func @transform_1(%arg0: i32) -> (i32, i32) {
    %c0_i32 = arith.constant 0 : i32
    %c0_i32_0 = arith.constant 0 : i32
    %c0_i32_1 = arith.constant 0 : i32
    return %c0_i32, %c0_i32_0 : i32, i32
  }
  func.func @transform_2(%arg0: i32) -> (i32, i32) {
    %c0_i32 = arith.constant 0 : i32
    %c0_i32_0 = arith.constant 0 : i32
    %c0_i32_1 = arith.constant 0 : i32
    return %c0_i32, %c0_i32_0 : i32, i32
  }
  func.func @transform_3(%arg0: i32) -> (i32, i32) {
    %c0_i32 = arith.constant 0 : i32
    %c0_i32_0 = arith.constant 0 : i32
    %c0_i32_1 = arith.constant 0 : i32
    return %c0_i32, %c0_i32_0 : i32, i32
  }
  func.func @transform_4(%arg0: i32) -> (i32, i32) {
    %c0_i32 = arith.constant 0 : i32
    %c0_i32_0 = arith.constant 0 : i32
    %c0_i32_1 = arith.constant 0 : i32
    return %c0_i32, %c0_i32_0 : i32, i32
  }
  func.func @transform_5(%arg0: i32) -> (i32, i32) {
    %c0_i32 = arith.constant 0 : i32
    %c0_i32_0 = arith.constant 0 : i32
    return %arg0, %c0_i32 : i32, i32
  }
}

</mosaic_0001>

<llo_original>
// kernel: tpu_custom_call.1
$region0: #{tpu_custom_call.1}
  #allocation0 [shape = 'u32[]', space=smem, size = 0x4, offset = 0x4, fixed_abs, tag = 'smem constant byte address 0x4 - core index']
  #allocation1 [shape = 'u32[72,128]{1,0:T(1,128)}', space=vmem, size = 0x9000, scoped, tag = 'internal scratch']
  %s0 = inlined_call_operand.hbm [shape: f32[125,128], index: 0, kind: input, shape index: {}]
  %s1 = inlined_call_operand.hbm [shape: bf16[128,256], index: 1, kind: input, shape index: {}]
  %s2 = inlined_call_operand.hbm [shape: f32[1,256], index: 2, kind: input, shape index: {}]
  %s3 = inlined_call_operand.hbm [shape: bf16[256,128], index: 3, kind: input, shape index: {}]
  %s4 = inlined_call_operand.vmem [shape: f32[1,128], index: 4, kind: input, shape index: {}]
  %s5 = inlined_call_operand.hbm [shape: f32[125,128], index: 5, kind: output, shape index: {}]
  %s6 = sld [smem:[#allocation0]]
  $region69: #{tpu_custom_call.1} parent=0
    _
  %s8 = ssub.s32 1, %s6
  %s9 = scalar_select 0, %s8, %s6
  $region1: #{tpu_custom_call.1} parent=0
    #allocation2 [shape = 'u8[16384]{0}', space=vmem, size = 0x4000, scoped, tag = 'input window, operand 0']
    #allocation3 [shape = 's32[2]{0}', space=sflag, size = 0x8, scoped, tag = 'scoped memory for tpu_custom_call.1']
    #allocation4 [shape = 's32[2]{0}', space=sflag, size = 0x8, scoped, tag = 'scoped memory for tpu_custom_call.1']
    #allocation5 [shape = 'u8[65536]{0}', space=vmem, size = 0x10000, scoped, tag = 'input window, operand 1, single buffered']
    #allocation6 [shape = 's32[1]{0}', space=sflag, size = 0x4, scoped, tag = 'scoped memory for tpu_custom_call.1']
    #allocation7 [shape = 'u8[1024]{0}', space=vmem, size = 0x400, scoped, tag = 'input window, operand 2, single buffered']
    #allocation8 [shape = 'u8[65536]{0}', space=vmem, size = 0x10000, scoped, tag = 'input window, operand 3, single buffered']
    #allocation9 [shape = 's32[1]{0}', space=sflag, size = 0x4, scoped, tag = 'scoped memory for tpu_custom_call.1']
    #allocation10 [shape = 'u8[16384]{0}', space=vmem, size = 0x4000, scoped, tag = 'output window, operand 0']
    %10 = vsyncpa [#allocation3], 0
    %s11 = scalar_lea.sflag [#allocation3], 1
    %12 = vsyncpa %s11, 0
    %13 = vsyncpa [#allocation6], 0
    %14 = vsyncpa [#allocation9], 0
    %15 = vsyncpa [#allocation4], 0
    %s16 = scalar_lea.sflag [#allocation4], 1
    %17 = vsyncpa %s16, 0
    loop: start=0, step=1, limit=10
    $region2: #{tpu_custom_call.1} parent=1 // loop_pre_header
      _
    $region3: #{tpu_custom_call.1} parent=1 // loop_header
      %s19 = sphi 0, %s23
      %p20 = scmp.ge.s32.totalorder %s19, 10
      %s29 = sphi 0, %s31
      %s32 = sphi 0, %s29
      %s33 = sphi 0, %s32
      %s49 = sphi 0, %s33
      %s53 = sphi 0, %s53
      %s55 = sphi 0, %s53
      %s56 = sphi 0, %s55
      %s70 = sphi 0, %s56
      %s74 = sphi 0, %s74
      %s76 = sphi 0, %s74
      %s77 = sphi 0, %s76
      %s91 = sphi 0, %s77
      %s95 = sphi 0, %s95
      %s97 = sphi 0, %s95
      %s98 = sphi 0, %s97
      %s112 = sphi 0, %s98
      %s116 = sphi 0, %s116
      %s118 = sphi 0, %s116
      %s119 = sphi 0, %s118
      %s133 = sphi 0, %s119
      %s139 = sphi 0, %s141
      %s142 = sphi 0, %s139
      %s143 = sphi 0, %s142
      %s159 = sphi 0, %s143
    $region4: #{tpu_custom_call.1} parent=1 // loop_header_branch
      %22 = sbr.rel (%p20) target = $region8
    $region5: #{tpu_custom_call.1} parent=1 // loop_body
      %s24 = ssub.s32 %s19, 1
      %s25 = ssub.s32 %s19, 2
      %s26 = sadd.s32 %s19, 1
      %s27 = ssub.s32 %s19, %s26
      %p28 = scmp.eq.s32.totalorder %s27, 0
      %s30 = sadd.s32 %s29, 1
      %s31 = scalar_select %p28, %s29, %s30
      %p34 = pneg %p28
      %p35 = scmp.eq.s32.totalorder %s19, 7
      %p36 = por %p34, %p35
      %p37 = scmp.ne.s32.totalorder %s29, %s32
      %p38 = scmp.eq.s32.totalorder %s19, 0
      %p39 = por %p37, %p38
      %p40 = scmp.ne.s32.totalorder %s29, %s32
      %p41 = scmp.eq.s32.totalorder %s24, 7
      %p42 = por %p40, %p41
      %p43 = scmp.ne.s32.totalorder %s32, %s33
      %p44 = scmp.eq.s32.totalorder %s24, 0
      %p45 = por %p43, %p44
      %p46 = scmp.ne.s32.totalorder %s32, %s33
      %p47 = scmp.eq.s32.totalorder %s25, 7
      %p48 = por %p46, %p47
      %p50 = scmp.ne.s32.totalorder %s33, %s49
      %p51 = scmp.eq.s32.totalorder %s25, 0
      %p52 = por %p50, %p51
      %s54 = sadd.s32 %s53, 1
      %p57 = scmp.eq.s32.totalorder %s19, 7
      %p58 = scmp.ne.s32.totalorder %s53, %s55
      %p59 = scmp.eq.s32.totalorder %s19, 0
      %p60 = por %p58, %p59
      %p61 = scmp.ne.s32.totalorder %s53, %s55
      %p62 = scmp.eq.s32.totalorder %s24, 7
      %p63 = por %p61, %p62
      %p64 = scmp.ne.s32.totalorder %s55, %s56
      %p65 = scmp.eq.s32.totalorder %s24, 0
      %p66 = por %p64, %p65
      %p67 = scmp.ne.s32.totalorder %s55, %s56
      %p68 = scmp.eq.s32.totalorder %s25, 7
      %p69 = por %p67, %p68
      %p71 = scmp.ne.s32.totalorder %s56, %s70
      %p72 = scmp.eq.s32.totalorder %s25, 0
      %p73 = por %p71, %p72
      %s75 = sadd.s32 %s74, 1
      %p78 = scmp.eq.s32.totalorder %s19, 7
      %p79 = scmp.ne.s32.totalorder %s74, %s76
      %p80 = scmp.eq.s32.totalorder %s19, 0
      %p81 = por %p79, %p80
      %p82 = scmp.ne.s32.totalorder %s74, %s76
      %p83 = scmp.eq.s32.totalorder %s24, 7
      %p84 = por %p82, %p83
      %p85 = scmp.ne.s32.totalorder %s76, %s77
      %p86 = scmp.eq.s32.totalorder %s24, 0
      %p87 = por %p85, %p86
      %p88 = scmp.ne.s32.totalorder %s76, %s77
      %p89 = scmp.eq.s32.totalorder %s25, 7
      %p90 = por %p88, %p89
      %p92 = scmp.ne.s32.totalorder %s77, %s91
      %p93 = scmp.eq.s32.totalorder %s25, 0
      %p94 = por %p92, %p93
      %s96 = sadd.s32 %s95, 1
      %p99 = scmp.eq.s32.totalorder %s19, 7
      %p100 = scmp.ne.s32.totalorder %s95, %s97
      %p101 = scmp.eq.s32.totalorder %s19, 0
      %p102 = por %p100, %p101
      %p103 = scmp.ne.s32.totalorder %s95, %s97
      %p104 = scmp.eq.s32.totalorder %s24, 7
      %p105 = por %p103, %p104
      %p106 = scmp.ne.s32.totalorder %s97, %s98
      %p107 = scmp.eq.s32.totalorder %s24, 0
      %p108 = por %p106, %p107
      %p109 = scmp.ne.s32.totalorder %s97, %s98
      %p110 = scmp.eq.s32.totalorder %s25, 7
      %p111 = por %p109, %p110
      %p113 = scmp.ne.s32.totalorder %s98, %s112
      %p114 = scmp.eq.s32.totalorder %s25, 0
      %p115 = por %p113, %p114
      %s117 = sadd.s32 %s116, 1
      %p120 = scmp.eq.s32.totalorder %s19, 7
      %p121 = scmp.ne.s32.totalorder %s116, %s118
      %p122 = scmp.eq.s32.totalorder %s19, 0
      %p123 = por %p121, %p122
      %p124 = scmp.ne.s32.totalorder %s116, %s118
      %p125 = scmp.eq.s32.totalorder %s24, 7
      %p126 = por %p124, %p125
      %p127 = scmp.ne.s32.totalorder %s118, %s119
      %p128 = scmp.eq.s32.totalorder %s24, 0
      %p129 = por %p127, %p128
      %p130 = scmp.ne.s32.totalorder %s118, %s119
      %p131 = scmp.eq.s32.totalorder %s25, 7
      %p132 = por %p130, %p131
      %p134 = scmp.ne.s32.totalorder %s119, %s133
      %p135 = scmp.eq.s32.totalorder %s25, 0
      %p136 = por %p134, %p135
      %s137 = ssub.s32 %s19, %s26
      %p138 = scmp.eq.s32.totalorder %s137, 0
      %s140 = sadd.s32 %s139, 1
      %s141 = scalar_select %p138, %s139, %s140
      %p144 = pneg %p138
      %p145 = scmp.eq.s32.totalorder %s19, 7
      %p146 = por %p144, %p145
      %p147 = scmp.ne.s32.totalorder %s139, %s142
      %p148 = scmp.eq.s32.totalorder %s19, 0
      %p149 = por %p147, %p148
      %p150 = scmp.ne.s32.totalorder %s139, %s142
      %p151 = scmp.eq.s32.totalorder %s24, 7
      %p152 = por %p150, %p151
      %p153 = scmp.ne.s32.totalorder %s142, %s143
      %p154 = scmp.eq.s32.totalorder %s24, 0
      %p155 = por %p153, %p154
      %p156 = scmp.ne.s32.totalorder %s142, %s143
      %p157 = scmp.eq.s32.totalorder %s25, 7
      %p158 = por %p156, %p157
      %p160 = scmp.ne.s32.totalorder %s143, %s159
      %p161 = scmp.eq.s32.totalorder %s25, 0
      %p162 = por %p160, %p161
      %p163 = scmp.le.s32.totalorder 1, %s19
      %p164 = scmp.lt.s32.totalorder %s19, 9
      %p165 = pnand %p163, %p164
      %p166 = pneg %p165
      // Predicated region
      $region9: #{tpu_custom_call.1} parent=5 // pred_check
        _
      $region10: #{tpu_custom_call.1} parent=5 // pred_check_branch
        %168 = sbr.rel (%p165) target = $region12
      $region11: #{tpu_custom_call.1} parent=5 // pred_region
        %s169 = ssub.s32 %s19, 1
        // Predicated region
        $region13: #{tpu_custom_call.1} parent=11 // pred_check
          %p170 = pneg %p66
        $region14: #{tpu_custom_call.1} parent=11 // pred_check_branch
          %172 = sbr.rel (%p170) target = $region16
        $region15: #{tpu_custom_call.1} parent=11 // pred_region
          %174 = vsyncadd [#allocation6], 0
          %s175 = sshll.u32 %s1, 4
          %s176 = int_to_ptr.hbm [resolvable:$true] %s175
          %s177 = sshll.u32 [#allocation5], 4
          %s178 = int_to_ptr.vmem [resolvable:$true] %s177
          %183 = dma.hbm_to_vmem [thread:$0]  %s176, 2048, %s178, [#allocation6], 128, 128, 8
        $region16: #{tpu_custom_call.1} parent=11 // pred_fallthru
          _
        // Predicated region
        $region17: #{tpu_custom_call.1} parent=11 // pred_check
          %p184 = pneg %p87
        $region18: #{tpu_custom_call.1} parent=11 // pred_check_branch
          %186 = sbr.rel (%p184) target = $region20
        $region19: #{tpu_custom_call.1} parent=11 // pred_region
          %188 = vsyncadd [#allocation6], 0
          %s190 = sshll.u32 %s2, 4
          %s191 = int_to_ptr.hbm [resolvable:$true] %s190
          %s192 = sshll.u32 [#allocation7], 4
          %s193 = int_to_ptr.vmem [resolvable:$true] %s192
          %195 = dma.hbm_to_vmem [thread:$0]  %s191, 32, %s193, [#allocation6]
        $region20: #{tpu_custom_call.1} parent=11 // pred_fallthru
          _
        // Predicated region
        $region21: #{tpu_custom_call.1} parent=11 // pred_check
          %p196 = pneg %p108
        $region22: #{tpu_custom_call.1} parent=11 // pred_check_branch
          %198 = sbr.rel (%p196) target = $region24
        $region23: #{tpu_custom_call.1} parent=11 // pred_region
          %200 = vsyncadd [#allocation9], 0
          %s201 = sshll.u32 %s3, 4
          %s202 = int_to_ptr.hbm [resolvable:$true] %s201
          %s203 = sshll.u32 [#allocation8], 4
          %s204 = int_to_ptr.vmem [resolvable:$true] %s203
          %209 = dma.hbm_to_vmem [thread:$0]  %s202, 2048, %s204, [#allocation9], 64, 64, 4
        $region24: #{tpu_custom_call.1} parent=11 // pred_fallthru
          _
        // Predicated region
        $region25: #{tpu_custom_call.1} parent=11 // pred_check
          %p210 = pneg %p129
        $region26: #{tpu_custom_call.1} parent=11 // pred_check_branch
          %212 = sbr.rel (%p210) target = $region28
        $region27: #{tpu_custom_call.1} parent=11 // pred_region
          _
        $region28: #{tpu_custom_call.1} parent=11 // pred_fallthru
          _
      $region12: #{tpu_custom_call.1} parent=5 // pred_fallthru
        _
      %p213 = scmp.lt.s32.totalorder %s19, 8
      // Predicated region
      $region29: #{tpu_custom_call.1} parent=5 // pred_check
        %p214 = pneg %p213
      $region30: #{tpu_custom_call.1} parent=5 // pred_check_branch
        %216 = sbr.rel (%p214) target = $region32
      $region31: #{tpu_custom_call.1} parent=5 // pred_region
        // Predicated region
        $region33: #{tpu_custom_call.1} parent=31 // pred_check
          %p217 = pneg %p39
        $region34: #{tpu_custom_call.1} parent=31 // pred_check_branch
          %219 = sbr.rel (%p217) target = $region36
        $region35: #{tpu_custom_call.1} parent=31 // pred_region
          %s220 = sand.u32 %s29, 1
          %s221 = scalar_lea.sflag [#allocation3], %s220
          %s222 = sand.u32 %s29, 1
          %s223 = smul.addr %s222, 16
          %s224 = scalar_lea.vmem [#allocation2], %s223
          %s225 = smul.u32 2, %s19
          %227 = vsyncadd %s221, 0
          %s228 = smul.addr %s225, 8
          %s229 = scalar_lea.hbm %s0, %s228
          %s230 = sshll.u32 %s229, 4
          %s231 = int_to_ptr.hbm [resolvable:$true] %s230
          %s232 = sshll.u32 %s224, 4
          %s233 = int_to_ptr.vmem [resolvable:$true] %s232
          %238 = dma.hbm_to_vmem [thread:$0]  %s231, 256, %s233, %s221, 128, 128, 8
        $region36: #{tpu_custom_call.1} parent=31 // pred_fallthru
          _
      $region32: #{tpu_custom_call.1} parent=5 // pred_fallthru
        _
      %p239 = scmp.le.s32.totalorder 1, %s19
      %p240 = scmp.lt.s32.totalorder %s19, 9
      %p241 = pnand %p239, %p240
      %p242 = pneg %p241
      // Predicated region
      $region37: #{tpu_custom_call.1} parent=5 // pred_check
        _
      $region38: #{tpu_custom_call.1} parent=5 // pred_check_branch
        %244 = sbr.rel (%p241) target = $region40
      $region39: #{tpu_custom_call.1} parent=5 // pred_region
        %s245 = ssub.s32 %s19, 1
        %s246 = sand.u32 %s32, 1
        %s247 = scalar_lea.sflag [#allocation3], %s246
        %s248 = sand.u32 %s32, 1
        %s249 = smul.addr %s248, 16
        %s250 = scalar_lea.vmem [#allocation2], %s249
        // Predicated region
        $region41: #{tpu_custom_call.1} parent=39 // pred_check
          %p251 = pneg %p45
        $region42: #{tpu_custom_call.1} parent=39 // pred_check_branch
          %253 = sbr.rel (%p251) target = $region44
        $region43: #{tpu_custom_call.1} parent=39 // pred_region
          %255 = dma.done %s247, 256
        $region44: #{tpu_custom_call.1} parent=39 // pred_fallthru
          _
        // Predicated region
        $region45: #{tpu_custom_call.1} parent=39 // pred_check
          %p256 = pneg %p66
        $region46: #{tpu_custom_call.1} parent=39 // pred_check_branch
          %258 = sbr.rel (%p256) target = $region48
        $region47: #{tpu_custom_call.1} parent=39 // pred_region
          %260 = dma.done [#allocation6], 2048
        $region48: #{tpu_custom_call.1} parent=39 // pred_fallthru
          _
        // Predicated region
        $region49: #{tpu_custom_call.1} parent=39 // pred_check
          %p261 = pneg %p87
        $region50: #{tpu_custom_call.1} parent=39 // pred_check_branch
          %263 = sbr.rel (%p261) target = $region52
        $region51: #{tpu_custom_call.1} parent=39 // pred_region
          %265 = dma.done [#allocation6], 32
        $region52: #{tpu_custom_call.1} parent=39 // pred_fallthru
          _
        // Predicated region
        $region53: #{tpu_custom_call.1} parent=39 // pred_check
          %p266 = pneg %p108
        $region54: #{tpu_custom_call.1} parent=39 // pred_check_branch
          %268 = sbr.rel (%p266) target = $region56
        $region55: #{tpu_custom_call.1} parent=39 // pred_region
          %270 = dma.done [#allocation9], 2048
        $region56: #{tpu_custom_call.1} parent=39 // pred_fallthru
          _
        %s271 = sand.u32 %s32, 1
        %s272 = scalar_lea.sflag [#allocation3], %s271
        %s273 = sand.u32 %s32, 1
        %s274 = smul.addr %s273, 16
        %s275 = scalar_lea.vmem [#allocation2], %s274
        %p276 = pneg %p45
        %p277 = pneg %p42
        %p278 = pneg %p66
        %p279 = pneg %p63
        %p280 = pneg %p87
        %p281 = pneg %p84
        %p282 = pneg %p108
        %p283 = pneg %p105
        %p284 = pneg %p129
        %p285 = pneg %p126
        %p286 = pneg %p155
        %p287 = pneg %p152
        %s288 = sand.u32 %s142, 1
        %s289 = scalar_lea.sflag [#allocation4], %s288
        %s290 = sand.u32 %s142, 1
        %s291 = smul.addr %s290, 16
        %s292 = scalar_lea.vmem [#allocation10], %s291
        %s293 = smul.u32 2, %s24
        %s294 = smul.u32 2, %s24
        %v295 = vld [vmem:[%s250] sm:$0xff]
        %v296 = vld [vmem:[%s250 + $0x8] sm:$0xff]
        %v297 = vmax.f32 %v295, 0.0
        %v298 = vmax.f32 %v296, 0.0
        %v299 = vpack.c.bf16 %v298, %v297
        %v300 = vld [vmem:[#allocation5] sm:$0xff]
        %v301 = vld [vmem:[#allocation5 + $0x8] sm:$0xff]
        %v302 = vld [vmem:[#allocation5 + $0x10] sm:$0xff]
        %v303 = vld [vmem:[#allocation5 + $0x18] sm:$0xff]
        %v304 = vld [vmem:[#allocation5 + $0x20] sm:$0xff]
        %v305 = vld [vmem:[#allocation5 + $0x28] sm:$0xff]
        %v306 = vld [vmem:[#allocation5 + $0x30] sm:$0xff]
        %v307 = vld [vmem:[#allocation5 + $0x38] sm:$0xff]
        %v308 = vld [vmem:[#allocation5 + $0x40] sm:$0xff]
        %v309 = vld [vmem:[#allocation5 + $0x48] sm:$0xff]
        %v310 = vld [vmem:[#allocation5 + $0x50] sm:$0xff]
        %v311 = vld [vmem:[#allocation5 + $0x58] sm:$0xff]
        %v312 = vld [vmem:[#allocation5 + $0x60] sm:$0xff]
        %v313 = vld [vmem:[#allocation5 + $0x68] sm:$0xff]
        %v314 = vld [vmem:[#allocation5 + $0x70] sm:$0xff]
        %v315 = vld [vmem:[#allocation5 + $0x78] sm:$0xff]
        %v316 = vld [vmem:[#allocation7] sm:$0x3]
        %v318 = vperm.slane %v316, 0
        %v319 = vperm.slane %v316, 1
        %v338 = vunpack.c.l.b16 %v300
        %v339 = vunpack.c.h.b16 %v300
        %v340 = vunpack.c.l.b16 %v301
        %v341 = vunpack.c.h.b16 %v301
        %v342 = vunpack.c.l.b16 %v302
        %v343 = vunpack.c.h.b16 %v302
        %v344 = vunpack.c.l.b16 %v303
        %v345 = vunpack.c.h.b16 %v303
        %v346 = vunpack.c.l.b16 %v304
        %v347 = vunpack.c.h.b16 %v304
        %v348 = vunpack.c.l.b16 %v305
        %v349 = vunpack.c.h.b16 %v305
        %v350 = vunpack.c.l.b16 %v306
        %v351 = vunpack.c.h.b16 %v306
        %v352 = vunpack.c.l.b16 %v307
        %v353 = vunpack.c.h.b16 %v307
        %v354 = vunpack.c.l.b16 %v308
        %v355 = vunpack.c.h.b16 %v308
        %v356 = vunpack.c.l.b16 %v309
        %v357 = vunpack.c.h.b16 %v309
        %v358 = vunpack.c.l.b16 %v310
        %v359 = vunpack.c.h.b16 %v310
        %v360 = vunpack.c.l.b16 %v311
        %v361 = vunpack.c.h.b16 %v311
        %v362 = vunpack.c.l.b16 %v312
        %v363 = vunpack.c.h.b16 %v312
        %v364 = vunpack.c.l.b16 %v313
        %v365 = vunpack.c.h.b16 %v313
        %v366 = vunpack.c.l.b16 %v314
        %v367 = vunpack.c.h.b16 %v314
        %v368 = vunpack.c.l.b16 %v315
        %v369 = vunpack.c.h.b16 %v315
        %v370 = vpack.c.b16 %v340, %v338
        %v371 = vpack.c.b16 %v341, %v339
        %v372 = vpack.c.b16 %v344, %v342
        %v373 = vpack.c.b16 %v345, %v343
        %v374 = vpack.c.b16 %v348, %v346
        %v375 = vpack.c.b16 %v349, %v347
        %v376 = vpack.c.b16 %v352, %v350
        %v377 = vpack.c.b16 %v353, %v351
        %v378 = vpack.c.b16 %v356, %v354
        %v379 = vpack.c.b16 %v357, %v355
        %v380 = vpack.c.b16 %v360, %v358
        %v381 = vpack.c.b16 %v361, %v359
        %v382 = vpack.c.b16 %v364, %v362
        %v383 = vpack.c.b16 %v365, %v363
        %v384 = vpack.c.b16 %v368, %v366
        %v385 = vpack.c.b16 %v369, %v367
        %402 = vmatpush.bf16.msra.mxu0 %v384
        %403 = vmatpush.bf16.msra.mxu0 %v382
        %404 = vmatpush.bf16.msra.mxu0 %v380
        %405 = vmatpush.bf16.msra.mxu0 %v378
        %406 = vmatpush.bf16.msra.mxu0 %v376
        %407 = vmatpush.bf16.msra.mxu0 %v374
        %408 = vmatpush.bf16.msra.mxu0 %v372
        %409 = vmatpush.bf16.msra.mxu0 %v370
        %410 = vmatmul.bf16.gmra.mxu0 %v299
        %v411 = vpop.f32.mrf.mxu0
        %v412 = vadd.f32 %v318, %v411
        %v413 = vpop.f32.mrf.mxu0
        %v414 = vadd.f32 %v318, %v413
        %415 = vdwg.mxu0
        %416 = vmatpush.bf16.msra.mxu0 %v385
        %417 = vmatpush.bf16.msra.mxu0 %v383
        %418 = vmatpush.bf16.msra.mxu0 %v381
        %419 = vmatpush.bf16.msra.mxu0 %v379
        %420 = vmatpush.bf16.msra.mxu0 %v377
        %421 = vmatpush.bf16.msra.mxu0 %v375
        %422 = vmatpush.bf16.msra.mxu0 %v373
        %423 = vmatpush.bf16.msra.mxu0 %v371
        %424 = vmatmul.bf16.gmra.mxu0 %v299
        %v425 = vpop.f32.mrf.mxu0
        %v426 = vadd.f32 %v319, %v425
        %v427 = vpop.f32.mrf.mxu0
        %v428 = vadd.f32 %v319, %v427
        %429 = vdwg.mxu0
        %v430 = vmax.f32 %v412, 0.0
        %v431 = vmax.f32 %v426, 0.0
        %v432 = vmax.f32 %v414, 0.0
        %v433 = vmax.f32 %v428, 0.0
        %v434 = vpack.c.bf16 %v432, %v430
        %v435 = vpack.c.bf16 %v433, %v431
        %v436 = vld [vmem:[#allocation8] sm:$0xf]
        %v437 = vld [vmem:[#allocation8 + $0x4] sm:$0xf]
        %v438 = vld [vmem:[#allocation8 + $0x8] sm:$0xf]
        %v439 = vld [vmem:[#allocation8 + $0xc] sm:$0xf]
        %v440 = vld [vmem:[#allocation8 + $0x10] sm:$0xf]
        %v441 = vld [vmem:[#allocation8 + $0x14] sm:$0xf]
        %v442 = vld [vmem:[#allocation8 + $0x18] sm:$0xf]
        %v443 = vld [vmem:[#allocation8 + $0x1c] sm:$0xf]
        %v444 = vld [vmem:[#allocation8 + $0x20] sm:$0xf]
        %v445 = vld [vmem:[#allocation8 + $0x24] sm:$0xf]
        %v446 = vld [vmem:[#allocation8 + $0x28] sm:$0xf]
        %v447 = vld [vmem:[#allocation8 + $0x2c] sm:$0xf]
        %v448 = vld [vmem:[#allocation8 + $0x30] sm:$0xf]
        %v449 = vld [vmem:[#allocation8 + $0x34] sm:$0xf]
        %v450 = vld [vmem:[#allocation8 + $0x38] sm:$0xf]
        %v451 = vld [vmem:[#allocation8 + $0x3c] sm:$0xf]
        %v452 = vld [vmem:[#allocation8 + $0x40] sm:$0xf]
        %v453 = vld [vmem:[#allocation8 + $0x44] sm:$0xf]
        %v454 = vld [vmem:[#allocation8 + $0x48] sm:$0xf]
        %v455 = vld [vmem:[#allocation8 + $0x4c] sm:$0xf]
        %v456 = vld [vmem:[#allocation8 + $0x50] sm:$0xf]
        %v457 = vld [vmem:[#allocation8 + $0x54] sm:$0xf]
        %v458 = vld [vmem:[#allocation8 + $0x58] sm:$0xf]
        %v459 = vld [vmem:[#allocation8 + $0x5c] sm:$0xf]
        %v460 = vld [vmem:[#allocation8 + $0x60] sm:$0xf]
        %v461 = vld [vmem:[#allocation8 + $0x64] sm:$0xf]
        %v462 = vld [vmem:[#allocation8 + $0x68] sm:$0xf]
        %v463 = vld [vmem:[#allocation8 + $0x6c] sm:$0xf]
        %v464 = vld [vmem:[#allocation8 + $0x70] sm:$0xf]
        %v465 = vld [vmem:[#allocation8 + $0x74] sm:$0xf]
        %v466 = vld [vmem:[#allocation8 + $0x78] sm:$0xf]
        %v467 = vld [vmem:[#allocation8 + $0x7c] sm:$0xf]
        %v468 = vld [vmem:[%s4] sm:$0x1]
        %v470 = vperm.slane %v468, 0
        %v504 = vunpack.c.l.b16 %v436
        %v505 = vunpack.c.l.b16 %v437
        %v506 = vunpack.c.l.b16 %v438
        %v507 = vunpack.c.l.b16 %v439
        %v508 = vunpack.c.l.b16 %v440
        %v509 = vunpack.c.l.b16 %v441
        %v510 = vunpack.c.l.b16 %v442
        %v511 = vunpack.c.l.b16 %v443
        %v512 = vunpack.c.l.b16 %v444
        %v513 = vunpack.c.l.b16 %v445
        %v514 = vunpack.c.l.b16 %v446
        %v515 = vunpack.c.l.b16 %v447
        %v516 = vunpack.c.l.b16 %v448
        %v517 = vunpack.c.l.b16 %v449
        %v518 = vunpack.c.l.b16 %v450
        %v519 = vunpack.c.l.b16 %v451
        %v520 = vunpack.c.l.b16 %v452
        %v521 = vunpack.c.l.b16 %v453
        %v522 = vunpack.c.l.b16 %v454
        %v523 = vunpack.c.l.b16 %v455
        %v524 = vunpack.c.l.b16 %v456
        %v525 = vunpack.c.l.b16 %v457
        %v526 = vunpack.c.l.b16 %v458
        %v527 = vunpack.c.l.b16 %v459
        %v528 = vunpack.c.l.b16 %v460
        %v529 = vunpack.c.l.b16 %v461
        %v530 = vunpack.c.l.b16 %v462
        %v531 = vunpack.c.l.b16 %v463
        %v532 = vunpack.c.l.b16 %v464
        %v533 = vunpack.c.l.b16 %v465
        %v534 = vunpack.c.l.b16 %v466
        %v535 = vunpack.c.l.b16 %v467
        %v536 = vpack.c.b16 %v505, %v504
        %v537 = vpack.c.b16 %v507, %v506
        %v538 = vpack.c.b16 %v509, %v508
        %v539 = vpack.c.b16 %v511, %v510
        %v540 = vpack.c.b16 %v513, %v512
        %v541 = vpack.c.b16 %v515, %v514
        %v542 = vpack.c.b16 %v517, %v516
        %v543 = vpack.c.b16 %v519, %v518
        %v544 = vpack.c.b16 %v521, %v520
        %v545 = vpack.c.b16 %v523, %v522
        %v546 = vpack.c.b16 %v525, %v524
        %v547 = vpack.c.b16 %v527, %v526
        %v548 = vpack.c.b16 %v529, %v528
        %v549 = vpack.c.b16 %v531, %v530
        %v550 = vpack.c.b16 %v533, %v532
        %v551 = vpack.c.b16 %v535, %v534
        %568 = vmatpush.bf16.msra.mxu0 %v543
        %569 = vmatpush.bf16.msra.mxu0 %v542
        %570 = vmatpush.bf16.msra.mxu0 %v541
        %571 = vmatpush.bf16.msra.mxu0 %v540
        %572 = vmatpush.bf16.msra.mxu0 %v539
        %573 = vmatpush.bf16.msra.mxu0 %v538
        %574 = vmatpush.bf16.msra.mxu0 %v537
        %575 = vmatpush.bf16.msra.mxu0 %v536
        %576 = vmatmul.bf16.gmra.mxu0 %v434
        %v577 = vpop.f32.mrf.mxu0
        %v578 = vadd.f32 %v470, %v577
        %v579 = vpop.f32.mrf.mxu0
        %v580 = vadd.f32 %v470, %v579
        %581 = vdwg.mxu0
        %582 = vmatpush.bf16.msra.mxu0 %v551
        %583 = vmatpush.bf16.msra.mxu0 %v550
        %584 = vmatpush.bf16.msra.mxu0 %v549
        %585 = vmatpush.bf16.msra.mxu0 %v548
        %586 = vmatpush.bf16.msra.mxu0 %v547
        %587 = vmatpush.bf16.msra.mxu0 %v546
        %588 = vmatpush.bf16.msra.mxu0 %v545
        %589 = vmatpush.bf16.msra.mxu0 %v544
        %590 = vmatmul.bf16.gmra.mxu0 %v435
        %v591 = vpop.f32.mrf.mxu0
        %v592 = vadd.f32 %v578, %v591
        %v593 = vpop.f32.mrf.mxu0
        %v594 = vadd.f32 %v580, %v593
        %595 = vdwg.mxu0
        %v596 = vadd.f32 %v295, %v592
        %v597 = vadd.f32 %v296, %v594
        %598 = vst [vmem:[%s292] sm:$0xff] %v596
        %599 = vst [vmem:[%s292 + $0x8] sm:$0xff] %v597
        %s600 = sand.u32 %s142, 1
        %s601 = scalar_lea.sflag [#allocation4], %s600
        %s602 = sand.u32 %s142, 1
        %s603 = smul.addr %s602, 16
        %s604 = scalar_lea.vmem [#allocation10], %s603
        // Predicated region
        $region57: #{tpu_custom_call.1} parent=39 // pred_check
          %p605 = pneg %p152
        $region58: #{tpu_custom_call.1} parent=39 // pred_check_branch
          %607 = sbr.rel (%p605) target = $region60
        $region59: #{tpu_custom_call.1} parent=39 // pred_region
          %s608 = smul.u32 2, %s24
          %610 = vsyncadd %s601, 0
          %s611 = smul.addr %s608, 8
          %s612 = scalar_lea.hbm %s5, %s611
          %s613 = sshll.u32 %s604, 4
          %s614 = int_to_ptr.vmem [resolvable:$true] %s613
          %s615 = sshll.u32 %s612, 4
          %s616 = int_to_ptr.hbm [resolvable:$true] %s615
          %621 = dma.vmem_to_hbm [thread:$0]  %s614, 256, %s616, %s601, 128, 128, 8
        $region60: #{tpu_custom_call.1} parent=39 // pred_fallthru
          _
      $region40: #{tpu_custom_call.1} parent=5 // pred_fallthru
        _
      %p622 = scmp.le.s32.totalorder 2, %s19
      // Predicated region
      $region61: #{tpu_custom_call.1} parent=5 // pred_check
        %p623 = pneg %p622
      $region62: #{tpu_custom_call.1} parent=5 // pred_check_branch
        %625 = sbr.rel (%p623) target = $region64
      $region63: #{tpu_custom_call.1} parent=5 // pred_region
        %s626 = ssub.s32 %s19, 2
        // Predicated region
        $region65: #{tpu_custom_call.1} parent=63 // pred_check
          %p627 = pneg %p158
        $region66: #{tpu_custom_call.1} parent=63 // pred_check_branch
          %629 = sbr.rel (%p627) target = $region68
        $region67: #{tpu_custom_call.1} parent=63 // pred_region
          %s630 = sand.u32 %s143, 1
          %s631 = scalar_lea.sflag [#allocation4], %s630
          %s632 = sand.u32 %s143, 1
          %s633 = smul.addr %s632, 16
          %s634 = scalar_lea.vmem [#allocation10], %s633
          %636 = dma.done %s631, 256
        $region68: #{tpu_custom_call.1} parent=63 // pred_fallthru
          _
      $region64: #{tpu_custom_call.1} parent=5 // pred_fallthru
        _
    $region6: #{tpu_custom_call.1} parent=1 // loop_footer
      %s23 = sadd.s32 1, %s19
    $region7: #{tpu_custom_call.1} parent=1 // loop_footer_branch
      %18 = sbr.rel target = $region3
    $region8: #{tpu_custom_call.1} parent=1 // loop_exit
      _
    %637 = vsyncpa [#allocation3], 1
    %s638 = scalar_lea.sflag [#allocation3], 1
    %639 = vsyncpa %s638, 1
    %640 = vsyncpa [#allocation6], 1
    %641 = vsyncpa [#allocation9], 1
    %642 = vsyncpa [#allocation4], 1
    %s643 = scalar_lea.sflag [#allocation4], 1
    %644 = vsyncpa %s643, 1

</llo_original>
